<compile_context>
chip_gen: v6e
topology: v6e:2x2x1
jax: 0.10.0
libtpu: 0.0.40
codegen_flags: <defaults>
</compile_context>

<pallas_src>
import functools

import jax
import jax.numpy as jnp
from jax.experimental import pallas as pl
from jax.experimental.pallas import tpu as pltpu


def _round_up(n, m):
    return ((n + m - 1) // m) * m


def _proto_loss_kernel(x_ref, cid_ref, w_ref, out_ref, *, num_classes, hw, tail):
    """Per-tile partial loss sum (pixels on lanes, classes on sublanes).

    x_ref  : (1, C, TL) float32  native NCHW slab slice (channels x pixels)
    cid_ref: (1, 1, TL) int32    mod(gt-1, K) if (entropy<=thresh & gt!=0) else -1
    w_ref  : (Kp, C)   float32   scale * l2norm(embedding), zero-padded rows
    out_ref: (8, 128)  float32   lane-dense partial-sum block (value at [0, 0])
    """
    x = x_ref[0]            # (C, TL)
    cid = cid_ref[0]        # (1, TL) int32
    w = w_ref[...]          # (Kp, C)
    tl = x.shape[-1]

    # per-pixel inverse norm (F.normalize, eps=1e-12):
    # 1/max(||x||,1e-12) == rsqrt(max(||x||^2, 1e-24))
    nrm2 = jnp.sum(x * x, axis=0, keepdims=True)                 # (1, TL)
    inv_norm = jax.lax.rsqrt(jnp.maximum(nrm2, 1e-24))           # (1, TL)

    # scaled cosine logits: canonical (M,K)@(K,N) -> (Kp, TL); per-pixel scale
    # applied to the (Kp, TL) result (Kp < C, cheaper than scaling x first).
    raw = jax.lax.dot_general(
        w, x, dimension_numbers=(((1,), (0,)), ((), ())),
        preferred_element_type=jnp.float32)                      # (Kp, TL)
    scaled = raw * inv_norm

    exp_c = jnp.exp(scaled)                                      # (Kp, TL)
    cls = jax.lax.broadcasted_iota(jnp.int32, exp_c.shape, 0)    # class index / sublane
    # mask padded class rows BEFORE the reduce (numerically safe vs subtracting)
    sum_all = jnp.sum(jnp.where(cls < num_classes, exp_c, 0.0),
                      axis=0, keepdims=True)                     # (1, TL)
    positive = jnp.sum(jnp.where(cls == cid, exp_c, 0.0),
                       axis=0, keepdims=True)                    # (1, TL)

    term = jnp.log(positive / (sum_all + 1e-7) + 1e-7)           # (1, TL)

    sel = cid >= 0                                               # combined gt/entropy mask
    if tail:
        # last pixel block overhangs HW: drop out-of-bounds lanes (their x/cid
        # reads are undefined; jnp.where discards any NaN they produced).
        j = pl.program_id(1)
        lane = jax.lax.broadcasted_iota(jnp.int32, (1, tl), 1)
        sel = sel & ((j * tl + lane) < hw)

    total = jnp.sum(jnp.where(sel, term, 0.0))

    # tiny epilogue: place the tile partial at [0, 0] of a lane-dense (8, 128)
    # block (one vreg of iota/select per multi-hundred-pixel tile).
    r = jax.lax.broadcasted_iota(jnp.int32, (8, 128), 0)
    c = jax.lax.broadcasted_iota(jnp.int32, (8, 128), 1)
    out_ref[...] = jnp.where((r == 0) & (c == 0), total, 0.0)


def only_cw_prototype_loss(x, gt, percent, entropy, embed_w, *, scale,
                           orthogonal_reg_weight=0.0, tl=2048):
    """JAX/Pallas forward of OnlyCWPrototypeLoss.

    x        : (B, C, H, W) float32   (NCHW, as in PyTorch)
    gt       : (B, 1, H, W) or (B, H, W) int
    percent  : python float, percentile for the entropy threshold
    entropy  : (B*H*W,) float32, flattened in (b, h, w) order
    embed_w  : (num_classes - 1, C) float32 prototype embedding weights
    """
    B, C, H, W = x.shape
    if gt.ndim == 3:
        gt = gt[:, None]
    assert gt.shape[-2:] == (H, W)   # nearest-interp to same size is identity
    HW = H * W
    N = B * HW
    K = embed_w.shape[0]

    # ---- free views (no transpose / no pad of x) -------------------------
    x3 = x.astype(jnp.float32).reshape(B, C, HW)          # NCHW view, no copy
    gt2 = gt.reshape(B, HW).astype(jnp.int32)

    # entropy percentile threshold (np.percentile -> jnp.percentile, linear)
    ent = entropy.reshape(-1).astype(jnp.float32)
    thresh = jnp.percentile(ent, percent)
    keep = (ent.reshape(B, HW) <= thresh) & (gt2 != 0)
    # pack label index + mask into one lane-dense int32 plane: -1 == masked out
    cid = jnp.where(keep, jnp.mod(gt2 - 1, K), -1).astype(jnp.int32)
    cid = cid[:, None, :]                                  # (B, 1, HW)

    # ---- grid-invariant prototype prep (hoisted out of the kernel) -------
    kp = _round_up(max(K, 8), 8)                           # classes on sublanes
    wn = embed_w.astype(jnp.float32)
    wn = wn / jnp.maximum(jnp.linalg.norm(wn, axis=-1, keepdims=True), 1e-12)
    w_pad = jnp.zeros((kp, C), jnp.float32).at[:K].set(float(scale) * wn)

    # ---- pixel-tile sizing ------------------------------------------------
    if HW < 128:
        tl_eff = HW                                        # full-extent lane block
    else:
        tl_eff = max(128, (min(int(tl), HW) // 128) * 128)
        # honest VMEM cap for the double-buffered x stream (safe on v7x 64 MiB)
        while 2 * _round_up(C, 8) * tl_eff * 4 > 20 * 1024 * 1024 and tl_eff > 128:
            tl_eff = max(128, ((tl_eff // 2) // 128) * 128)
        # make sure the parallel grid spans >= 2 cells (v7x: 2 TensorCores)
        if B == 1 and HW >= 256:
            tl_eff = min(tl_eff, max(128, ((HW // 2) // 128) * 128))
    n_chunks = pl.cdiv(HW, tl_eff)
    tail = (n_chunks * tl_eff != HW)

    # honest scoped-VMEM estimate (sublane/lane padding included)
    xb = _round_up(C, 8) * tl_eff * 4
    cb = 8 * tl_eff * 4
    wb = _round_up(kp, 8) * _round_up(C, 128) * 4
    ob = 8 * 128 * 4
    est = 2 * (xb + cb + wb + ob)                          # double-buffered
    vmem_limit = int(min(max(4 * est, 16 * 1024 * 1024), 40 * 1024 * 1024))

    kernel = functools.partial(_proto_loss_kernel,
                               num_classes=K, hw=HW, tail=tail)
    partials = pl.pallas_call(
        kernel,
        out_shape=jax.ShapeDtypeStruct((B * n_chunks * 8, 128), jnp.float32),
        grid_spec=pltpu.PrefetchScalarGridSpec(
            num_scalar_prefetch=0,
            grid=(B, n_chunks),
            in_specs=[
                pl.BlockSpec((1, C, tl_eff), lambda b, j: (b, 0, j)),   # x (NCHW view)
                pl.BlockSpec((1, 1, tl_eff), lambda b, j: (b, 0, j)),   # packed idx/mask
                pl.BlockSpec((kp, C), lambda b, j: (0, 0)),             # prototypes
            ],
            out_specs=pl.BlockSpec((8, 128),
                                   lambda b, j, _n=n_chunks: (b * _n + j, 0)),
        ),
        compiler_params=pltpu.CompilerParams(
            dimension_semantics=("parallel", "parallel"),
            vmem_limit_bytes=vmem_limit),
    )(x3, cid, w_pad)

    loss = -jnp.sum(partials) / N

    if orthogonal_reg_weight > 0:
        cs = wn @ wn.T
        loss = loss + orthogonal_reg_weight * (
            (cs ** 2).sum() / (K ** 2) - 1.0 / K)
    return loss


def _ref_loss(x, gt, percent, entropy, embed_w, scale):
    """Pure-JAX reference of the PyTorch forward (row-major math, for verification)."""
    B, C, H, W = x.shape
    if gt.ndim == 3:
        gt = gt[:, None]
    N = B * H * W
    fx = jnp.transpose(x, (0, 2, 3, 1)).reshape(N, C).astype(jnp.float32)
    fg = jnp.transpose(gt, (0, 2, 3, 1)).reshape(N).astype(jnp.int32)
    wn = embed_w / jnp.maximum(
        jnp.linalg.norm(embed_w, axis=-1, keepdims=True), 1e-12)
    xn = fx / jnp.maximum(jnp.linalg.norm(fx, axis=-1, keepdims=True), 1e-12)
    cos = (xn @ wn.T) * scale
    thresh = jnp.percentile(entropy.reshape(-1), percent)
    tmask = entropy.reshape(N) <= thresh
    K = embed_w.shape[0]
    pos = jnp.exp(cos[jnp.arange(N), jnp.mod(fg - 1, K)])
    mask = (tmask & (fg != 0)).astype(jnp.float32)
    sum_all = jnp.sum(jnp.exp(cos), axis=-1)
    return -jnp.mean(jnp.log(pos / (sum_all + 1e-7) + 1e-7) * mask)


if __name__ == "__main__":
    key = jax.random.PRNGKey(0)
    k1, k2, k3, k4 = jax.random.split(key, 4)

    B, num_classes, embedding_dim, H, W = 2, 5, 32, 16, 16
    K = num_classes - 1
    scale, percent = 30.0, 70.0
    N = B * H * W

    x = jax.random.normal(k1, (B, embedding_dim, H, W), jnp.float32)
    gt = jax.random.randint(k2, (B, 1, H, W), 0, num_classes, jnp.int32)
    entropy = jax.random.uniform(k3, (N,), jnp.float32)
    # deterministic 'normal' init of the prototype embedding (K, D)
    embed_w = jax.random.normal(k4, (K, embedding_dim), jnp.float32)

    loss = only_cw_prototype_loss(x, gt, percent, entropy, embed_w, scale=scale)
    loss = jax.block_until_ready(loss)

    ref = _ref_loss(x, gt, percent, entropy, embed_w, scale)
    assert jnp.allclose(loss, ref, rtol=1e-4, atol=1e-4), (loss, ref)
    print("KERNEL_OK")
</pallas_src>

<mosaic_0001>
module attributes {stable_mosaic.version = 11 : i64} {
  func.func @_proto_loss_kernel(%arg0: i32, %arg1: i32, %arg2: memref<1x32x256xf32, #tpu.memory_space<vmem>>, %arg3: memref<1x1x256xi32, #tpu.memory_space<vmem>>, %arg4: memref<8x32xf32, #tpu.memory_space<vmem>>, %arg5: memref<8x128xf32, #tpu.memory_space<vmem>>) attributes {dimension_semantics = [#tpu.dimension_semantics<parallel>, #tpu.dimension_semantics<parallel>], iteration_bounds = array<i64: 2, 1>, scalar_prefetch = 0 : i64, scratch_operands = 0 : i64, tpu.core_type = #tpu.core_type<tc>, window_params = [{transform_indices = @transform_0, window_bounds = array<i64: 1, 32, 256>}, {transform_indices = @transform_1, window_bounds = array<i64: 1, 1, 256>}, {pipeline_mode = #tpu.pipeline_mode<synchronous>, transform_indices = @transform_2, window_bounds = array<i64: 8, 32>}, {transform_indices = @transform_3, window_bounds = array<i64: 8, 128>}]} {
    %c0 = arith.constant 0 : index
    %c0_0 = arith.constant 0 : index
    %c0_1 = arith.constant 0 : index
    %0 = vector.load %arg2[%c0, %c0_0, %c0_1] : memref<1x32x256xf32, #tpu.memory_space<vmem>>, vector<1x32x256xf32>
    %1 = vector.shape_cast %0 : vector<1x32x256xf32> to vector<32x256xf32>
    %c0_2 = arith.constant 0 : index
    %c0_3 = arith.constant 0 : index
    %c0_4 = arith.constant 0 : index
    %2 = vector.load %arg3[%c0_2, %c0_3, %c0_4] : memref<1x1x256xi32, #tpu.memory_space<vmem>>, vector<1x1x256xi32>
    %3 = vector.shape_cast %2 : vector<1x1x256xi32> to vector<1x256xi32>
    %c0_5 = arith.constant 0 : index
    %c0_6 = arith.constant 0 : index
    %4 = vector.load %arg4[%c0_5, %c0_6] : memref<8x32xf32, #tpu.memory_space<vmem>>, vector<8x32xf32>
    %5 = arith.mulf %1, %1 : vector<32x256xf32>
    %cst = arith.constant dense<0.000000e+00> : vector<256xf32>
    %6 = vector.multi_reduction <add>, %5, %cst [0] : vector<32x256xf32> to vector<256xf32>
    %7 = vector.shape_cast %6 : vector<256xf32> to vector<1x256xf32>
    %cst_7 = arith.constant 1.000000e-24 : f32
    %8 = vector.broadcast %cst_7 : f32 to vector<1x256xf32>
    %9 = arith.maximumf %7, %8 : vector<1x256xf32>
    %10 = math.rsqrt %9 : vector<1x256xf32>
    %cst_8 = arith.constant dense<0.000000e+00> : vector<8x256xf32>
    %11 = tpu.matmul %4, %1, %cst_8 {dimension_numbers = #tpu.dot_dimension_numbers<[1], [0], [0], [1], [0, 0, 1, 1], [], []>} : vector<8x32xf32>, vector<32x256xf32>, vector<8x256xf32> -> vector<8x256xf32>
    %12 = vector.broadcast %10 : vector<1x256xf32> to vector<8x256xf32>
    %13 = arith.mulf %11, %12 : vector<8x256xf32>
    %14 = math.exp %13 : vector<8x256xf32>
    %15 = tpu.iota {dimensions = array<i32: 0>} : vector<8x256xi32>
    %c4_i32 = arith.constant 4 : i32
    %16 = vector.broadcast %c4_i32 : i32 to vector<8x256xi32>
    %17 = arith.cmpi slt, %15, %16 : vector<8x256xi32>
    %cst_9 = arith.constant 0.000000e+00 : f32
    %18 = vector.broadcast %cst_9 : f32 to vector<8x256xf32>
    %19 = arith.select %17, %14, %18 : vector<8x256xi1>, vector<8x256xf32>
    %cst_10 = arith.constant dense<0.000000e+00> : vector<256xf32>
    %20 = vector.multi_reduction <add>, %19, %cst_10 [0] : vector<8x256xf32> to vector<256xf32>
    %21 = vector.shape_cast %20 : vector<256xf32> to vector<1x256xf32>
    %22 = vector.broadcast %3 : vector<1x256xi32> to vector<8x256xi32>
    %23 = arith.cmpi eq, %15, %22 : vector<8x256xi32>
    %cst_11 = arith.constant 0.000000e+00 : f32
    %24 = vector.broadcast %cst_11 : f32 to vector<8x256xf32>
    %25 = arith.select %23, %14, %24 : vector<8x256xi1>, vector<8x256xf32>
    %cst_12 = arith.constant dense<0.000000e+00> : vector<256xf32>
    %26 = vector.multi_reduction <add>, %25, %cst_12 [0] : vector<8x256xf32> to vector<256xf32>
    %27 = vector.shape_cast %26 : vector<256xf32> to vector<1x256xf32>
    %cst_13 = arith.constant 1.000000e-07 : f32
    %28 = vector.broadcast %cst_13 : f32 to vector<1x256xf32>
    %29 = arith.addf %21, %28 : vector<1x256xf32>
    %30 = arith.divf %27, %29 : vector<1x256xf32>
    %cst_14 = arith.constant 1.000000e-07 : f32
    %31 = vector.broadcast %cst_14 : f32 to vector<1x256xf32>
    %32 = arith.addf %30, %31 : vector<1x256xf32>
    %33 = math.log %32 : vector<1x256xf32>
    %c0_i32 = arith.constant 0 : i32
    %34 = vector.broadcast %c0_i32 : i32 to vector<1x256xi32>
    %35 = arith.cmpi sge, %3, %34 : vector<1x256xi32>
    %cst_15 = arith.constant 0.000000e+00 : f32
    %36 = vector.broadcast %cst_15 : f32 to vector<1x256xf32>
    %37 = arith.select %35, %33, %36 : vector<1x256xi1>, vector<1x256xf32>
    %38 = vector.shape_cast %37 : vector<1x256xf32> to vector<1x1x256xf32>
    %cst_16 = arith.constant dense<0.000000e+00> : vector<1xf32>
    %39 = vector.multi_reduction <add>, %38, %cst_16 [1, 2] : vector<1x1x256xf32> to vector<1xf32>
    %40 = vector.shape_cast %39 : vector<1xf32> to vector<1x1x1xf32>
    %41 = vector.extract %40[0, 0, 0] : f32 from vector<1x1x1xf32>
    %42 = tpu.iota {dimensions = array<i32: 0>} : vector<8x128xi32>
    %43 = tpu.iota {dimensions = array<i32: 1>} : vector<8x128xi32>
    %c0_i32_17 = arith.constant 0 : i32
    %44 = vector.broadcast %c0_i32_17 : i32 to vector<8x128xi32>
    %45 = arith.cmpi eq, %42, %44 : vector<8x128xi32>
    %c0_i32_18 = arith.constant 0 : i32
    %46 = vector.broadcast %c0_i32_18 : i32 to vector<8x128xi32>
    %47 = arith.cmpi eq, %43, %46 : vector<8x128xi32>
    %48 = arith.andi %45, %47 : vector<8x128xi1>
    %cst_19 = arith.constant 0.000000e+00 : f32
    %49 = vector.broadcast %41 : f32 to vector<8x128xf32>
    %50 = vector.broadcast %cst_19 : f32 to vector<8x128xf32>
    %51 = arith.select %48, %49, %50 : vector<8x128xi1>, vector<8x128xf32>
    %c0_20 = arith.constant 0 : index
    %c0_21 = arith.constant 0 : index
    %52 = vector.load %arg5[%c0_20, %c0_21] : memref<8x128xf32, #tpu.memory_space<vmem>>, vector<8x128xf32>
    tpu.vector_store %arg5[%c0_20, %c0_21], %51 {strides = array<i32>} : memref<8x128xf32, #tpu.memory_space<vmem>>, vector<8x128xf32>,
    return
  }
  func.func @transform_0(%arg0: i32, %arg1: i32) -> (i32, i32, i32) {
    %c0_i32 = arith.constant 0 : i32
    %c0_i32_0 = arith.constant 0 : i32
    return %arg0, %c0_i32, %arg1 : i32, i32, i32
  }
  func.func @transform_1(%arg0: i32, %arg1: i32) -> (i32, i32, i32) {
    %c0_i32 = arith.constant 0 : i32
    %c0_i32_0 = arith.constant 0 : i32
    return %arg0, %c0_i32, %arg1 : i32, i32, i32
  }
  func.func @transform_2(%arg0: i32, %arg1: i32) -> (i32, i32) {
    %c0_i32 = arith.constant 0 : i32
    %c0_i32_0 = arith.constant 0 : i32
    %c0_i32_1 = arith.constant 0 : i32
    return %c0_i32, %c0_i32_0 : i32, i32
  }
  func.func @transform_3(%arg0: i32, %arg1: i32) -> (i32, i32) {
    %c1_i32 = arith.constant 1 : i32
    %0 = arith.muli %arg0, %c1_i32 : i32
    %1 = arith.addi %0, %arg1 : i32
    %c0_i32 = arith.constant 0 : i32
    %c0_i32_0 = arith.constant 0 : i32
    return %1, %c0_i32 : i32, i32
  }
}

</mosaic_0001>

<llo_original>
// kernel: tpu_custom_call.1
$region0: #{tpu_custom_call.1}
  #allocation0 [shape = 'u32[]', space=smem, size = 0x4, offset = 0x4, fixed_abs, tag = 'smem constant byte address 0x4 - core index']
  #allocation1 [shape = 'u32[144,128]{1,0:T(1,128)}', space=vmem, size = 0x12000, scoped, tag = 'internal scratch']
  %s0 = inlined_call_operand.hbm [shape: f32[2,32,256], index: 0, kind: input, shape index: {}]
  %s1 = inlined_call_operand.hbm [shape: s32[2,1,256], index: 1, kind: input, shape index: {}]
  %s2 = inlined_call_operand.hbm [shape: f32[8,32], index: 2, kind: input, shape index: {}]
  %s3 = inlined_call_operand.hbm [shape: f32[16,128], index: 3, kind: output, shape index: {}]
  %s4 = sld [smem:[#allocation0]]
  $region57: #{tpu_custom_call.1} parent=0
    _
  %s6 = ssub.s32 1, %s4
  %s7 = scalar_select 0, %s6, %s4
  $region1: #{tpu_custom_call.1} parent=0
    #allocation2 [shape = 'u8[65536]{0}', space=vmem, size = 0x10000, scoped, tag = 'input window, operand 0']
    #allocation3 [shape = 's32[2]{0}', space=sflag, size = 0x8, scoped, tag = 'scoped memory for tpu_custom_call.1']
    #allocation4 [shape = 's32[2]{0}', space=sflag, size = 0x8, scoped, tag = 'scoped memory for tpu_custom_call.1']
    #allocation5 [shape = 'u8[2048]{0}', space=vmem, size = 0x800, scoped, tag = 'input window, operand 1']
    #allocation6 [shape = 's32[2]{0}', space=sflag, size = 0x8, scoped, tag = 'scoped memory for tpu_custom_call.1']
    #allocation7 [shape = 'u8[4096]{0}', space=vmem, size = 0x1000, scoped, tag = 'input window, operand 2, single buffered']
    #allocation8 [shape = 'u8[8192]{0}', space=vmem, size = 0x2000, scoped, tag = 'output window, operand 0']
    %8 = vsyncpa [#allocation3], 0
    %s9 = scalar_lea.sflag [#allocation3], 1
    %10 = vsyncpa %s9, 0
    %11 = vsyncpa [#allocation6], 0
    %s12 = scalar_lea.sflag [#allocation6], 1
    %13 = vsyncpa %s12, 0
    %14 = vsyncpa [#allocation4], 0
    %s15 = scalar_lea.sflag [#allocation4], 1
    %16 = vsyncpa %s15, 0
    loop: start=0, step=1, limit=4
    $region2: #{tpu_custom_call.1} parent=1 // loop_pre_header
      _
    $region3: #{tpu_custom_call.1} parent=1 // loop_header
      %s18 = sphi 0, %s22
      %p19 = scmp.ge.s32.totalorder %s18, 4
      %s25 = sphi 0, %s37
      %s26 = sphi 0, %s33
      %s27 = sphi 0, %s25
      %s28 = sphi 0, %s26
      %s29 = sphi 0, %s27
      %s30 = sphi 0, %s28
      %s42 = sphi 0, %s44
      %s45 = sphi 0, %s42
      %s46 = sphi 0, %s45
      %s62 = sphi 0, %s46
      %s70 = sphi 0, %s72
      %s73 = sphi 0, %s70
      %s74 = sphi 0, %s73
      %s90 = sphi 0, %s74
      %s94 = sphi 0, %s94
      %s96 = sphi 0, %s94
      %s97 = sphi 0, %s96
      %s111 = sphi 0, %s97
      %s119 = sphi 0, %s121
      %s122 = sphi 0, %s119
      %s123 = sphi 0, %s122
      %s139 = sphi 0, %s123
    $region4: #{tpu_custom_call.1} parent=1 // loop_header_branch
      %21 = sbr.rel (%p19) target = $region8
    $region5: #{tpu_custom_call.1} parent=1 // loop_body
      %s23 = ssub.s32 %s18, 1
      %s24 = ssub.s32 %s18, 2
      %s31 = sadd.s32 1, %s26
      %p32 = scmp.ge.s32.totalorder %s31, 1
      %s33 = scalar_select %p32, 0, %s31
      %s34 = sadd.s32 1, %s25
      %s35 = scalar_select %p32, %s34, %s25
      %p36 = scmp.ge.s32.totalorder %s35, 2
      %s37 = scalar_select %p36, 0, %s35
      %s38 = ssub.s32 %s25, %s37
      %s39 = ssub.s32 %s26, %s33
      %s40 = sor.u32 %s38, %s39
      %p41 = scmp.eq.s32.totalorder %s40, 0
      %s43 = sadd.s32 %s42, 1
      %s44 = scalar_select %p41, %s42, %s43
      %p47 = pneg %p41
      %p48 = scmp.eq.s32.totalorder %s18, 1
      %p49 = por %p47, %p48
      %p50 = scmp.ne.s32.totalorder %s42, %s45
      %p51 = scmp.eq.s32.totalorder %s18, 0
      %p52 = por %p50, %p51
      %p53 = scmp.ne.s32.totalorder %s42, %s45
      %p54 = scmp.eq.s32.totalorder %s23, 1
      %p55 = por %p53, %p54
      %p56 = scmp.ne.s32.totalorder %s45, %s46
      %p57 = scmp.eq.s32.totalorder %s23, 0
      %p58 = por %p56, %p57
      %p59 = scmp.ne.s32.totalorder %s45, %s46
      %p60 = scmp.eq.s32.totalorder %s24, 1
      %p61 = por %p59, %p60
      %p63 = scmp.ne.s32.totalorder %s46, %s62
      %p64 = scmp.eq.s32.totalorder %s24, 0
      %p65 = por %p63, %p64
      %s66 = ssub.s32 %s25, %s37
      %s67 = ssub.s32 %s26, %s33
      %s68 = sor.u32 %s66, %s67
      %p69 = scmp.eq.s32.totalorder %s68, 0
      %s71 = sadd.s32 %s70, 1
      %s72 = scalar_select %p69, %s70, %s71
      %p75 = pneg %p69
      %p76 = scmp.eq.s32.totalorder %s18, 1
      %p77 = por %p75, %p76
      %p78 = scmp.ne.s32.totalorder %s70, %s73
      %p79 = scmp.eq.s32.totalorder %s18, 0
      %p80 = por %p78, %p79
      %p81 = scmp.ne.s32.totalorder %s70, %s73
      %p82 = scmp.eq.s32.totalorder %s23, 1
      %p83 = por %p81, %p82
      %p84 = scmp.ne.s32.totalorder %s73, %s74
      %p85 = scmp.eq.s32.totalorder %s23, 0
      %p86 = por %p84, %p85
      %p87 = scmp.ne.s32.totalorder %s73, %s74
      %p88 = scmp.eq.s32.totalorder %s24, 1
      %p89 = por %p87, %p88
      %p91 = scmp.ne.s32.totalorder %s74, %s90
      %p92 = scmp.eq.s32.totalorder %s24, 0
      %p93 = por %p91, %p92
      %s95 = sadd.s32 %s94, 1
      %p98 = scmp.eq.s32.totalorder %s18, 1
      %p99 = scmp.ne.s32.totalorder %s94, %s96
      %p100 = scmp.eq.s32.totalorder %s18, 0
      %p101 = por %p99, %p100
      %p102 = scmp.ne.s32.totalorder %s94, %s96
      %p103 = scmp.eq.s32.totalorder %s23, 1
      %p104 = por %p102, %p103
      %p105 = scmp.ne.s32.totalorder %s96, %s97
      %p106 = scmp.eq.s32.totalorder %s23, 0
      %p107 = por %p105, %p106
      %p108 = scmp.ne.s32.totalorder %s96, %s97
      %p109 = scmp.eq.s32.totalorder %s24, 1
      %p110 = por %p108, %p109
      %p112 = scmp.ne.s32.totalorder %s97, %s111
      %p113 = scmp.eq.s32.totalorder %s24, 0
      %p114 = por %p112, %p113
      %s115 = sadd.s32 %s25, %s26
      %s116 = sadd.s32 %s37, %s33
      %s117 = ssub.s32 %s115, %s116
      %p118 = scmp.eq.s32.totalorder %s117, 0
      %s120 = sadd.s32 %s119, 1
      %s121 = scalar_select %p118, %s119, %s120
      %p124 = pneg %p118
      %p125 = scmp.eq.s32.totalorder %s18, 1
      %p126 = por %p124, %p125
      %p127 = scmp.ne.s32.totalorder %s119, %s122
      %p128 = scmp.eq.s32.totalorder %s18, 0
      %p129 = por %p127, %p128
      %p130 = scmp.ne.s32.totalorder %s119, %s122
      %p131 = scmp.eq.s32.totalorder %s23, 1
      %p132 = por %p130, %p131
      %p133 = scmp.ne.s32.totalorder %s122, %s123
      %p134 = scmp.eq.s32.totalorder %s23, 0
      %p135 = por %p133, %p134
      %p136 = scmp.ne.s32.totalorder %s122, %s123
      %p137 = scmp.eq.s32.totalorder %s24, 1
      %p138 = por %p136, %p137
      %p140 = scmp.ne.s32.totalorder %s123, %s139
      %p141 = scmp.eq.s32.totalorder %s24, 0
      %p142 = por %p140, %p141
      %p143 = scmp.le.s32.totalorder 1, %s18
      %p144 = scmp.lt.s32.totalorder %s18, 3
      %p145 = pnand %p143, %p144
      %p146 = pneg %p145
      // Predicated region
      $region9: #{tpu_custom_call.1} parent=5 // pred_check
        _
      $region10: #{tpu_custom_call.1} parent=5 // pred_check_branch
        %148 = sbr.rel (%p145) target = $region12
      $region11: #{tpu_custom_call.1} parent=5 // pred_region
        %s149 = ssub.s32 %s18, 1
        // Predicated region
        $region13: #{tpu_custom_call.1} parent=11 // pred_check
          %p150 = pneg %p107
        $region14: #{tpu_custom_call.1} parent=11 // pred_check_branch
          %152 = sbr.rel (%p150) target = $region16
        $region15: #{tpu_custom_call.1} parent=11 // pred_region
          %s154 = ssub.s32 128, 128
          %155 = vsyncadd [#allocation6], %s154
          %s157 = sshll.u32 [#allocation7], 4
          %s158 = int_to_ptr.vmem [resolvable:$true] %s157
          %160 = dma.hbm_to_vmem [thread:$0]  %s2, 128, %s158, [#allocation6]
        $region16: #{tpu_custom_call.1} parent=11 // pred_fallthru
          _
      $region12: #{tpu_custom_call.1} parent=5 // pred_fallthru
        _
      %p161 = scmp.lt.s32.totalorder %s18, 2
      // Predicated region
      $region17: #{tpu_custom_call.1} parent=5 // pred_check
        %p162 = pneg %p161
      $region18: #{tpu_custom_call.1} parent=5 // pred_check_branch
        %164 = sbr.rel (%p162) target = $region20
      $region19: #{tpu_custom_call.1} parent=5 // pred_region
        // Predicated region
        $region21: #{tpu_custom_call.1} parent=19 // pred_check
          %p165 = pneg %p52
        $region22: #{tpu_custom_call.1} parent=19 // pred_check_branch
          %167 = sbr.rel (%p165) target = $region24
        $region23: #{tpu_custom_call.1} parent=19 // pred_region
          %s168 = sand.u32 %s42, 1
          %s169 = scalar_lea.sflag [#allocation3], %s168
          %s170 = sand.u32 %s42, 1
          %s171 = smul.addr %s170, 64
          %s172 = scalar_lea.vmem [#allocation2], %s171
          %s173 = smul.u32 2, %s26
          %s175 = ssub.s32 1024, 1024
          %176 = vsyncadd %s169, %s175
          %s177 = smul.addr %s25, 8
          %s178 = sadd.s32 %s173, %s177
          %s179 = smul.addr %s178, 128
          %s180 = scalar_lea.hbm %s0, %s179
          %s181 = sshll.u32 %s172, 4
          %s182 = int_to_ptr.vmem [resolvable:$true] %s181
          %187 = dma.hbm_to_vmem [thread:$0]  %s180, 1024, %s182, %s169, 256, 256, 16
        $region24: #{tpu_custom_call.1} parent=19 // pred_fallthru
          _
        // Predicated region
        $region25: #{tpu_custom_call.1} parent=19 // pred_check
          %p188 = pneg %p80
        $region26: #{tpu_custom_call.1} parent=19 // pred_check_branch
          %190 = sbr.rel (%p188) target = $region28
        $region27: #{tpu_custom_call.1} parent=19 // pred_region
          %s191 = sand.u32 %s18, 1
          %s192 = scalar_lea.sflag [#allocation6], %s191
          %s193 = sand.u32 %s70, 1
          %s194 = smul.addr %s193, 2
          %s195 = scalar_lea.vmem [#allocation5], %s194
          %s196 = smul.u32 2, %s26
          %s198 = ssub.s32 32, 32
          %199 = vsyncadd %s192, %s198
          %s200 = smul.addr %s25, 2
          %s201 = sadd.s32 %s196, %s200
          %s202 = smul.addr %s201, 16
          %s203 = scalar_lea.hbm %s1, %s202
          %s205 = sshll.u32 %s195, 4
          %s206 = int_to_ptr.vmem [resolvable:$true] %s205
          %208 = dma.hbm_to_vmem [thread:$0]  %s203, 32, %s206, %s192
        $region28: #{tpu_custom_call.1} parent=19 // pred_fallthru
          _
      $region20: #{tpu_custom_call.1} parent=5 // pred_fallthru
        _
      %p209 = scmp.le.s32.totalorder 1, %s18
      %p210 = scmp.lt.s32.totalorder %s18, 3
      %p211 = pnand %p209, %p210
      %p212 = pneg %p211
      // Predicated region
      $region29: #{tpu_custom_call.1} parent=5 // pred_check
        _
      $region30: #{tpu_custom_call.1} parent=5 // pred_check_branch
        %214 = sbr.rel (%p211) target = $region32
      $region31: #{tpu_custom_call.1} parent=5 // pred_region
        %s215 = ssub.s32 %s18, 1
        %s216 = sand.u32 %s45, 1
        %s217 = scalar_lea.sflag [#allocation3], %s216
        %s218 = sand.u32 %s45, 1
        %s219 = smul.addr %s218, 64
        %s220 = scalar_lea.vmem [#allocation2], %s219
        // Predicated region
        $region33: #{tpu_custom_call.1} parent=31 // pred_check
          %p221 = pneg %p58
        $region34: #{tpu_custom_call.1} parent=31 // pred_check_branch
          %223 = sbr.rel (%p221) target = $region36
        $region35: #{tpu_custom_call.1} parent=31 // pred_region
          %224 = dma.done %s217, 1024
        $region36: #{tpu_custom_call.1} parent=31 // pred_fallthru
          _
        %s225 = sand.u32 %s23, 1
        %s226 = scalar_lea.sflag [#allocation6], %s225
        %s227 = sand.u32 %s73, 1
        %s228 = smul.addr %s227, 2
        %s229 = scalar_lea.vmem [#allocation5], %s228
        // Predicated region
        $region37: #{tpu_custom_call.1} parent=31 // pred_check
          %p230 = pneg %p86
        $region38: #{tpu_custom_call.1} parent=31 // pred_check_branch
          %232 = sbr.rel (%p230) target = $region40
        $region39: #{tpu_custom_call.1} parent=31 // pred_region
          %233 = dma.done %s226, 32
        $region40: #{tpu_custom_call.1} parent=31 // pred_fallthru
          _
        // Predicated region
        $region41: #{tpu_custom_call.1} parent=31 // pred_check
          %p234 = pneg %p107
        $region42: #{tpu_custom_call.1} parent=31 // pred_check_branch
          %236 = sbr.rel (%p234) target = $region44
        $region43: #{tpu_custom_call.1} parent=31 // pred_region
          %237 = dma.done [#allocation6], 128
        $region44: #{tpu_custom_call.1} parent=31 // pred_fallthru
          _
        %s238 = sand.u32 %s45, 1
        %s239 = scalar_lea.sflag [#allocation3], %s238
        %s240 = sand.u32 %s45, 1
        %s241 = smul.addr %s240, 64
        %s242 = scalar_lea.vmem [#allocation2], %s241
        %p243 = pneg %p58
        %p244 = pneg %p55
        %s245 = sand.u32 %s23, 1
        %s246 = scalar_lea.sflag [#allocation6], %s245
        %s247 = sand.u32 %s73, 1
        %s248 = smul.addr %s247, 2
        %s249 = scalar_lea.vmem [#allocation5], %s248
        %p250 = pneg %p86
        %p251 = pneg %p83
        %p252 = pneg %p107
        %p253 = pneg %p104
        %p254 = pneg %p135
        %p255 = pneg %p132
        %s256 = sand.u32 %s122, 1
        %s257 = scalar_lea.sflag [#allocation4], %s256
        %s258 = sand.u32 %s122, 1
        %s259 = smul.addr %s258, 8
        %s260 = scalar_lea.vmem [#allocation8], %s259
        %s261 = smul.u32 2, %s28
        %s262 = smul.u32 2, %s28
        %s263 = sadd.s32 %s27, %s28
        %v264 = vld [vmem:[%s220] sm:$0xff]
        %v265 = vld [vmem:[%s220 + $0x8] sm:$0xff]
        %v266 = vld [vmem:[%s220 + $0x10] sm:$0xff]
        %v267 = vld [vmem:[%s220 + $0x18] sm:$0xff]
        %v268 = vld [vmem:[%s220 + $0x20] sm:$0xff]
        %v269 = vld [vmem:[%s220 + $0x28] sm:$0xff]
        %v270 = vld [vmem:[%s220 + $0x30] sm:$0xff]
        %v271 = vld [vmem:[%s220 + $0x38] sm:$0xff]
        %v272 = vld [vmem:[%s229] sm:$0x3]
        %v273 = vld [vmem:[#allocation7] sm:$0xff]
        %v274 = vmul.f32 %v264, %v264
        %v275 = vmul.f32 %v265, %v265
        %v276 = vmul.f32 %v266, %v266
        %v277 = vmul.f32 %v267, %v267
        %v278 = vmul.f32 %v268, %v268
        %v279 = vmul.f32 %v269, %v269
        %v280 = vmul.f32 %v270, %v270
        %v281 = vmul.f32 %v271, %v271
        %v282 = vadd.f32 %v274, %v276
        %v283 = vadd.f32 %v282, %v278
        %v284 = vadd.f32 %v283, %v280
        %v285 = vrot.slane %v284, 4
        %v286 = vadd.f32 %v284, %v285
        %v287 = vrot.slane %v286, 2
        %v288 = vadd.f32 %v286, %v287
        %v289 = vrot.slane %v288, 1
        %v290 = vadd.f32 %v288, %v289
        %v291 = vadd.f32 %v275, %v277
        %v292 = vadd.f32 %v291, %v279
        %v293 = vadd.f32 %v292, %v281
        %v294 = vrot.slane %v293, 4
        %v295 = vadd.f32 %v293, %v294
        %v296 = vrot.slane %v295, 2
        %v297 = vadd.f32 %v295, %v296
        %v298 = vrot.slane %v297, 1
        %v299 = vadd.f32 %v297, %v298
        %v300 = vmax.f32 %v290, 1e-24
        %v301 = vmax.f32 %v299, 1e-24
        %v302 = vrsqrt.pop %v300
        %v303 = vrsqrt.pop %v301
        %vm304 = vcmask 261120
        %v306 = vsel %vm304, %v273, 0
        %308 = vmatprep.subr.mxu0 0.0
        %309 = vmatpush1.msra.mxu0 0.0
        %310 = vmatprep.subr.mxu0 0.0
        %311 = vmatpush1.msra.mxu0 0.0
        %312 = vmatprep.subr.mxu0 0.0
        %313 = vmatpush1.msra.mxu0 0.0
        %314 = vmatprep.subr.mxu0 0.0
        %315 = vmatpush1.msra.mxu0 0.0
        %316 = vmatprep.subr.mxu0 0.0
        %317 = vmatpush1.msra.mxu0 0.0
        %318 = vmatprep.subr.mxu0 0.0
        %319 = vmatpush1.msra.mxu0 0.0
        %320 = vmatprep.subr.mxu0 0.0
        %321 = vmatpush1.msra.mxu0 0.0
        %322 = vmatprep.subr.mxu0 0.0
        %323 = vmatpush1.msra.mxu0 0.0
        %324 = vmatprep.subr.mxu0 0.0
        %325 = vmatpush1.msra.mxu0 0.0
        %326 = vmatprep.subr.mxu0 0.0
        %327 = vmatpush1.msra.mxu0 0.0
        %328 = vmatprep.subr.mxu0 0.0
        %329 = vmatpush1.msra.mxu0 0.0
        %330 = vmatprep.subr.mxu0 0.0
        %331 = vmatpush1.msra.mxu0 0.0
        %332 = vmatprep.subr.mxu0 %v271
        %333 = vmatpush1.msra.mxu0 %v270
        %334 = vmatprep.subr.mxu0 %v269
        %335 = vmatpush1.msra.mxu0 %v268
        %336 = vmatprep.subr.mxu0 %v267
        %337 = vmatpush1.msra.mxu0 %v266
        %338 = vmatprep.subr.mxu0 %v265
        %339 = vmatpush1.msra.mxu0 %v264
        %340 = vmatprep.subr.mxu0 0.0
        %341 = vmatpush2.msra.mxu0 0.0
        %342 = vmatprep.subr.mxu0 0.0
        %343 = vmatpush2.msra.mxu0 0.0
        %344 = vmatprep.subr.mxu0 0.0
        %345 = vmatpush2.msra.mxu0 0.0
        %346 = vmatprep.subr.mxu0 0.0
        %347 = vmatpush2.msra.mxu0 0.0
        %348 = vmatprep.subr.mxu0 0.0
        %349 = vmatpush2.msra.mxu0 0.0
        %350 = vmatprep.subr.mxu0 0.0
        %351 = vmatpush2.msra.mxu0 0.0
        %352 = vmatprep.subr.mxu0 0.0
        %353 = vmatpush2.msra.mxu0 0.0
        %354 = vmatprep.subr.mxu0 0.0
        %355 = vmatpush2.msra.mxu0 0.0
        %356 = vmatprep.subr.mxu0 0.0
        %357 = vmatpush2.msra.mxu0 0.0
        %358 = vmatprep.subr.mxu0 0.0
        %359 = vmatpush2.msra.mxu0 0.0
        %360 = vmatprep.subr.mxu0 0.0
        %361 = vmatpush2.msra.mxu0 0.0
        %362 = vmatprep.subr.mxu0 0.0
        %363 = vmatpush2.msra.mxu0 0.0
        %364 = vmatprep.subr.mxu0 0.0
        %365 = vmatpush2.msra.mxu0 0.0
        %366 = vmatprep.subr.mxu0 0.0
        %367 = vmatpush2.msra.mxu0 0.0
        %368 = vmatprep.subr.mxu0 0.0
        %369 = vmatpush2.msra.mxu0 0.0
        %370 = vmatprep.subr.mxu0 0.0
        %371 = vmatpush2.msra.mxu0 0.0
        %372 = vmatprep.mubr.f32.mxu0 0.0
        %373 = vmatmul.mubr.f32.gmra.mxu0 %v306
        %v374 = vpop.f32.mrf.mxu0
        %v375 = vadd.f32 0.0, %v374
        %v376 = vpop.f32.mrf.mxu0
        %v377 = vadd.f32 0.0, %v376
        %378 = vdwg.mxu0
        %v379 = vmul.f32 %v375, %v302
        %v380 = vmul.f32 %v377, %v303
        %v381 = vmul.f32 %v379, 1.442695
        %v382 = vpow.pop %v381
        %v383 = vmul.f32 %v380, 1.442695
        %v384 = vpow.pop %v383
        %v385 = vlaneseq
        %v386 = vshrl.u32 %v385, 7
        %vm387 = vcmp.lt.s32.totalorder %v386, 4
        %v388 = vsel %vm387, %v382, 0.0
        %v389 = vsel %vm387, %v384, 0.0
        %v390 = vrot.slane %v388, 4
        %v391 = vadd.f32 %v388, %v390
        %v392 = vrot.slane %v391, 2
        %v393 = vadd.f32 %v391, %v392
        %v394 = vrot.slane %v393, 1
        %v395 = vadd.f32 %v393, %v394
        %v396 = vrot.slane %v389, 4
        %v397 = vadd.f32 %v389, %v396
        %v398 = vrot.slane %v397, 2
        %v399 = vadd.f32 %v397, %v398
        %v400 = vrot.slane %v399, 1
        %v401 = vadd.f32 %v399, %v400
        %v402 = vlaneseq
        %v403 = vshrl.u32 %v402, 7
        %v404 = vsub.s32 0, %v403
        %v405 = vrot.slane %v272, %v404
        %v406 = vlaneseq
        %v407 = vshrl.u32 %v406, 7
        %v408 = vsub.s32 1, %v407
        %v409 = vrot.slane %v272, %v408
        %vm410 = vcmp.eq.s32.totalorder %v386, %v405
        %vm411 = vcmp.eq.s32.totalorder %v386, %v409
        %v412 = vsel %vm410, %v382, 0.0
        %v413 = vsel %vm411, %v384, 0.0
        %v414 = vrot.slane %v412, 4
        %v415 = vadd.f32 %v412, %v414
        %v416 = vrot.slane %v415, 2
        %v417 = vadd.f32 %v415, %v416
        %v418 = vrot.slane %v417, 1
        %v419 = vadd.f32 %v417, %v418
        %v420 = vrot.slane %v413, 4
        %v421 = vadd.f32 %v413, %v420
        %v422 = vrot.slane %v421, 2
        %v423 = vadd.f32 %v421, %v422
        %v424 = vrot.slane %v423, 1
        %v425 = vadd.f32 %v423, %v424
        %v426 = vadd.f32 %v395, 1e-07
        %v427 = vadd.f32 %v401, 1e-07
        %v428 = vrcp.pop %v426
        %v429 = vmul.f32 %v419, %v428
        %v430 = vrcp.pop %v427
        %v431 = vmul.f32 %v425, %v430
        %v432 = vadd.f32 %v429, 1e-07
        %v433 = vadd.f32 %v431, 1e-07
        %v434 = vlog2.pop %v432
        %v435 = vmul.f32 %v434, 0.6931472
        %v436 = vlog2.pop %v433
        %v437 = vmul.f32 %v436, 0.6931472
        %vm438 = vcmp.ge.s32.totalorder %v272, 0
        %v441 = vcombine.low %v435, %v437
        %v443 = vunpack.c.l.s4 1966171168
        %v444 = vunpack.c.0.s8 %v443
        %v445 = vlaneseq
        %v446 = vshrl.u32 %v445, 7
        %v447 = vsub.s32 %v444, %v446
        %v448 = vrot.slane %v441, %v447
        %v450 = vunpack.c.l.s4 1966171168
        %v451 = vunpack.c.0.s8 %v450
        %v452 = vlaneseq
        %v453 = vshrl.u32 %v452, 7
        %v454 = vsub.s32 %v451, %v453
        %v455 = vrot.slane %v448, %v454
        %v457 = vsel %vm438, %v455, 0.0
        %v459 = vlaneseq
        %v460 = vshrl.u32 %v459, 7
        %v461 = vsub.s32 0, %v460
        %v462 = vrot.slane %v457, %v461
        %v463 = vlaneseq
        %v464 = vshrl.u32 %v463, 7
        %v465 = vsub.s32 1, %v464
        %v466 = vrot.slane %v457, %v465
        %vm469 = vcmask 1040384
        %v470 = vsel %vm469, %v462, 0.0
        %v471 = vsel %vm469, %v466, 0.0
        %v472 = vadd.f32 %v470, %v471
        %473 = vadd.xlane.f32.xlu0 %v472
        %v474 = vpop.xlane.xlu0 %473
        %v475 = vrot.slane %v474, 4
        %v476 = vadd.f32 %v474, %v475
        %v477 = vrot.slane %v476, 2
        %v478 = vadd.f32 %v476, %v477
        %v479 = vrot.slane %v478, 1
        %v480 = vadd.f32 %v478, %v479
        %s481 = vtos %v480
        %v482 = vlaneseq
        %v483 = vand.u32 %v482, 127
        %vm484 = vcmp.eq.s32.totalorder %v386, 0
        %vm485 = vcmp.eq.s32.totalorder %v483, 0
        %vm486 = vmand %vm484, %vm485
        %v487 = vstv %s481
        %v488 = vsel %vm486, %v487, 0.0
        %489 = vst [vmem:[%s260] sm:$0xff] %v488
        %s490 = sand.u32 %s122, 1
        %s491 = scalar_lea.sflag [#allocation4], %s490
        %s492 = sand.u32 %s122, 1
        %s493 = smul.addr %s492, 8
        %s494 = scalar_lea.vmem [#allocation8], %s493
        // Predicated region
        $region45: #{tpu_custom_call.1} parent=31 // pred_check
          %p495 = pneg %p132
        $region46: #{tpu_custom_call.1} parent=31 // pred_check_branch
          %497 = sbr.rel (%p495) target = $region48
        $region47: #{tpu_custom_call.1} parent=31 // pred_region
          %s498 = sadd.s32 %s27, %s28
          %s500 = ssub.s32 128, 128
          %501 = vsyncadd %s491, %s500
          %s502 = smul.addr %s498, 128
          %s503 = scalar_lea.hbm %s3, %s502
          %s505 = sshll.u32 %s494, 4
          %s506 = int_to_ptr.vmem [resolvable:$true] %s505
          %508 = dma.vmem_to_hbm [thread:$0]  %s506, 128, %s503, %s491
        $region48: #{tpu_custom_call.1} parent=31 // pred_fallthru
          _
      $region32: #{tpu_custom_call.1} parent=5 // pred_fallthru
        _
      %p509 = scmp.le.s32.totalorder 2, %s18
      // Predicated region
      $region49: #{tpu_custom_call.1} parent=5 // pred_check
        %p510 = pneg %p509
      $region50: #{tpu_custom_call.1} parent=5 // pred_check_branch
        %512 = sbr.rel (%p510) target = $region52
      $region51: #{tpu_custom_call.1} parent=5 // pred_region
        %s513 = ssub.s32 %s18, 2
        // Predicated region
        $region53: #{tpu_custom_call.1} parent=51 // pred_check
          %p514 = pneg %p138
        $region54: #{tpu_custom_call.1} parent=51 // pred_check_branch
          %516 = sbr.rel (%p514) target = $region56
        $region55: #{tpu_custom_call.1} parent=51 // pred_region
          %s517 = sand.u32 %s123, 1
          %s518 = scalar_lea.sflag [#allocation4], %s517
          %s519 = sand.u32 %s123, 1
          %s520 = smul.addr %s519, 8
          %s521 = scalar_lea.vmem [#allocation8], %s520
          %522 = dma.done %s518, 128
        $region56: #{tpu_custom_call.1} parent=51 // pred_fallthru
          _
      $region52: #{tpu_custom_call.1} parent=5 // pred_fallthru
        _
    $region6: #{tpu_custom_call.1} parent=1 // loop_footer
      %s22 = sadd.s32 1, %s18
    $region7: #{tpu_custom_call.1} parent=1 // loop_footer_branch
      %17 = sbr.rel target = $region3
    $region8: #{tpu_custom_call.1} parent=1 // loop_exit
      _
    %523 = vsyncpa [#allocation3], 1
    %s524 = scalar_lea.sflag [#allocation3], 1
    %525 = vsyncpa %s524, 1
    %526 = vsyncpa [#allocation6], 1
    %s527 = scalar_lea.sflag [#allocation6], 1
    %528 = vsyncpa %s527, 1
    %529 = vsyncpa [#allocation4], 1
    %s530 = scalar_lea.sflag [#allocation4], 1
    %531 = vsyncpa %s530, 1

</llo_original>
